<compile_context>
chip_gen: v6e
topology: v6e:2x2x1
jax: 0.10.0
libtpu: 0.0.40
codegen_flags: <defaults>
</compile_context>

<pallas_src>
import jax
import jax.numpy as jnp
import numpy as np
from jax.experimental import pallas as pl
from jax.experimental.pallas import tpu as pltpu

LANE = 128      # TPU lane width (last dim)
SUBLANE = 8     # TPU sublane count (second-to-last dim)
TB_MAX = 256    # max batch-rows tile (matches v6e/v7x MXU tile)
TN_MAX = 2048   # max output-lane tile (keeps blocks comfortably inside VMEM)


def _round_up(x, m):
    return ((x + m - 1) // m) * m


def meta_module_kernel(m_ref, w_ref, b_ref, o_ref):
    # Single MXU matmul: (tb, K) @ (K, tn) with f32 accumulation.
    acc = jnp.dot(m_ref[...], w_ref[...], preferred_element_type=jnp.float32)
    # Bias add in f32 (VPU, sublane broadcast). Dropout p=0 (eval) is identity.
    # TODO(synk): Dropout with p>0 in train mode would need pltpu.prng_seed +
    # pltpu.stateful_bernoulli; not implemented here.
    o_ref[...] = acc + b_ref[...]


def _meta_matmul(m_pad, w_pad, b_pad, tb, tn):
    B, K = m_pad.shape
    _, N = w_pad.shape
    grid = (B // tb, N // tn)
    return pl.pallas_call(
        meta_module_kernel,
        out_shape=jax.ShapeDtypeStruct((B, N), jnp.float32),
        grid_spec=pltpu.PrefetchScalarGridSpec(
            num_scalar_prefetch=0,
            grid=grid,
            in_specs=[
                pl.BlockSpec((tb, K), lambda i, j: (i, 0)),
                pl.BlockSpec((K, tn), lambda i, j: (0, j)),
                pl.BlockSpec((1, tn), lambda i, j: (0, j)),
            ],
            out_specs=pl.BlockSpec((tb, tn), lambda i, j: (i, j)),
        ),
        compiler_params=pltpu.CompilerParams(
            dimension_semantics=("parallel", "parallel")),
    )(m_pad, w_pad, b_pad)


def init_meta_module(connections, meta_weight, meta_bias=None,
                     compute_dtype=jnp.bfloat16):
    """One-time setup: fold the static scatter into the weight, pad to
    lane-dense shapes, and cast to the MXU compute dtype (done ONCE, not per
    forward call)."""
    connections = jnp.asarray(connections, dtype=bool)
    state_size = int(connections.shape[0])
    n_conn = int(connections.sum())

    # Correctness guards (see review): shapes must match the torch masked
    # assignment exactly, and nonzero(size=) must not pad with fake index 0.
    assert meta_weight.shape == (n_conn, n_conn), (
        "kernel reproduces mesa_parameter_size == connections.sum(); the "
        "P==1 broadcast case of the torch code is not supported")
    conn_idx = jnp.nonzero(connections, size=n_conn)[0]

    # Fold scatter into the weight: W_s[:, conn_idx[j]] = meta_weight[:, j].
    w_folded = jnp.zeros((n_conn, state_size), jnp.float32)
    w_folded = w_folded.at[:, conn_idx].set(meta_weight.astype(jnp.float32))

    # Pad contraction dim and output lane dim to multiples of 128, pick the
    # output tile tn (and pad N so tn divides it).
    k_pad = _round_up(n_conn, LANE)
    n_lane = _round_up(state_size, LANE)
    tn = min(n_lane, TN_MAX)
    n_pad = _round_up(n_lane, tn)

    w_pad = jnp.zeros((k_pad, n_pad), jnp.float32)
    w_pad = w_pad.at[:n_conn, :state_size].set(w_folded)
    w_pad = w_pad.astype(compute_dtype)   # bf16 on the MXU, f32 accumulation

    if meta_bias is None:
        meta_bias = jnp.zeros((state_size,), jnp.float32)
    b_pad = jnp.zeros((1, n_pad), jnp.float32)
    b_pad = b_pad.at[0, :state_size].set(meta_bias.astype(jnp.float32))

    return dict(w_pad=w_pad, b_pad=b_pad, n_conn=n_conn, state_size=state_size,
                k_pad=k_pad, n_pad=n_pad, tn=tn, compute_dtype=compute_dtype)


def make_meta_module_fn(params):
    """Returns a jitted forward accepting (n_conn,) or (B, n_conn)."""
    w_pad = params["w_pad"]
    b_pad = params["b_pad"]
    n_conn = params["n_conn"]
    state_size = params["state_size"]
    k_pad = params["k_pad"]
    tn = params["tn"]
    compute_dtype = params["compute_dtype"]

    @jax.jit
    def forward(mesa_parameter):
        single = mesa_parameter.ndim == 1
        m = mesa_parameter[None, :] if single else mesa_parameter
        B = m.shape[0]
        assert m.shape[1] == n_conn, "mesa_parameter length must be connections.sum()"
        # Pad batch rows to >= 8 sublanes and to a multiple of the M tile.
        b_rows = _round_up(max(B, SUBLANE), SUBLANE)
        tb = min(b_rows, TB_MAX)
        b_rows = _round_up(b_rows, tb)
        m_pad = jnp.zeros((b_rows, k_pad), compute_dtype)
        m_pad = m_pad.at[:B, :n_conn].set(m.astype(compute_dtype))
        out = _meta_matmul(m_pad, w_pad, b_pad, tb, tn)
        out = out[:B, :state_size]
        return out[0] if single else out

    return forward


if __name__ == "__main__":
    # Synthetic base_model: state_structure = {'w': (4, 4), 'b': (16,)}
    #   -> state_size = 32, meta_connections = ['w'] -> first 16 slots connected.
    state_size = 32
    n_conn = 16
    connections = jnp.concatenate(
        [jnp.ones((16,), dtype=bool), jnp.zeros((16,), dtype=bool)])

    key = jax.random.PRNGKey(0)
    k_w, k_m = jax.random.split(key)

    # meta_weight ~ U[-1, 1) as in __init__ (INIT_RANGE = 1), meta_bias = zeros.
    INIT_RANGE = 1.0
    meta_weight = (jax.random.uniform(k_w, (n_conn, n_conn), jnp.float32)
                   * 2.0 * INIT_RANGE - INIT_RANGE)
    meta_bias = jnp.zeros((state_size,), jnp.float32)

    params = init_meta_module(connections, meta_weight, meta_bias,
                              compute_dtype=jnp.bfloat16)
    fwd = make_meta_module_fn(params)

    # Batched call (fills all 8 sublanes) plus the original single-vector path.
    B = 8
    mesa_batch = jax.random.uniform(k_m, (B, n_conn), jnp.float32)
    out_batch = jax.block_until_ready(fwd(mesa_batch))
    out_single = jax.block_until_ready(fwd(mesa_batch[0]))

    # Pure-JAX/numpy reference of the exact PyTorch forward, evaluated on the
    # same bf16-rounded inputs the MXU sees (accumulation is f32 in both).
    conn_idx = np.nonzero(np.asarray(connections))[0]
    w_bf = np.asarray(meta_weight.astype(jnp.bfloat16).astype(jnp.float32))
    m_bf = np.asarray(mesa_batch.astype(jnp.bfloat16).astype(jnp.float32))
    y = m_bf @ w_bf                                    # (B, n_conn)
    ref = np.zeros((B, state_size), np.float32)
    ref[:, conn_idx] = y
    ref += np.asarray(meta_bias)

    np.testing.assert_allclose(np.asarray(out_batch), ref, rtol=1e-3, atol=1e-5)
    np.testing.assert_allclose(np.asarray(out_single), ref[0], rtol=1e-3, atol=1e-5)

    print("KERNEL_OK")
</pallas_src>

<mosaic_0001>
module attributes {stable_mosaic.version = 11 : i64} {
  func.func @meta_module_kernel(%arg0: i32, %arg1: i32, %arg2: memref<8x128xbf16, #tpu.memory_space<vmem>>, %arg3: memref<128x128xbf16, #tpu.memory_space<vmem>>, %arg4: memref<1x128xf32, #tpu.memory_space<vmem>>, %arg5: memref<8x128xf32, #tpu.memory_space<vmem>>) attributes {dimension_semantics = [#tpu.dimension_semantics<parallel>, #tpu.dimension_semantics<parallel>], iteration_bounds = array<i64: 1, 1>, scalar_prefetch = 0 : i64, scratch_operands = 0 : i64, tpu.core_type = #tpu.core_type<tc>, window_params = [{transform_indices = @transform_0, window_bounds = array<i64: 8, 128>}, {transform_indices = @transform_1, window_bounds = array<i64: 128, 128>}, {transform_indices = @transform_2, window_bounds = array<i64: 1, 128>}, {transform_indices = @transform_3, window_bounds = array<i64: 8, 128>}]} {
    %c0 = arith.constant 0 : index
    %c0_0 = arith.constant 0 : index
    %0 = vector.load %arg2[%c0, %c0_0] : memref<8x128xbf16, #tpu.memory_space<vmem>>, vector<8x128xbf16>
    %c0_1 = arith.constant 0 : index
    %c0_2 = arith.constant 0 : index
    %1 = vector.load %arg3[%c0_1, %c0_2] : memref<128x128xbf16, #tpu.memory_space<vmem>>, vector<128x128xbf16>
    %cst = arith.constant dense<0.000000e+00> : vector<8x128xf32>
    %2 = tpu.matmul %0, %1, %cst {dimension_numbers = #tpu.dot_dimension_numbers<[1], [0], [0], [1], [0, 0, 1, 1], [], []>} : vector<8x128xbf16>, vector<128x128xbf16>, vector<8x128xf32> -> vector<8x128xf32>
    %c0_3 = arith.constant 0 : index
    %c0_4 = arith.constant 0 : index
    %3 = vector.load %arg4[%c0_3, %c0_4] : memref<1x128xf32, #tpu.memory_space<vmem>>, vector<1x128xf32>
    %4 = vector.broadcast %3 : vector<1x128xf32> to vector<8x128xf32>
    %5 = arith.addf %2, %4 : vector<8x128xf32>
    %c0_5 = arith.constant 0 : index
    %c0_6 = arith.constant 0 : index
    %6 = vector.load %arg5[%c0_5, %c0_6] : memref<8x128xf32, #tpu.memory_space<vmem>>, vector<8x128xf32>
    tpu.vector_store %arg5[%c0_5, %c0_6], %5 {strides = array<i32>} : memref<8x128xf32, #tpu.memory_space<vmem>>, vector<8x128xf32>,
    return
  }
  func.func @transform_0(%arg0: i32, %arg1: i32) -> (i32, i32) {
    %c0_i32 = arith.constant 0 : i32
    %c0_i32_0 = arith.constant 0 : i32
    return %arg0, %c0_i32 : i32, i32
  }
  func.func @transform_1(%arg0: i32, %arg1: i32) -> (i32, i32) {
    %c0_i32 = arith.constant 0 : i32
    %c0_i32_0 = arith.constant 0 : i32
    return %c0_i32, %arg1 : i32, i32
  }
  func.func @transform_2(%arg0: i32, %arg1: i32) -> (i32, i32) {
    %c0_i32 = arith.constant 0 : i32
    %c0_i32_0 = arith.constant 0 : i32
    return %c0_i32, %arg1 : i32, i32
  }
  func.func @transform_3(%arg0: i32, %arg1: i32) -> (i32, i32) {
    %c0_i32 = arith.constant 0 : i32
    return %arg0, %arg1 : i32, i32
  }
}

</mosaic_0001>

<llo_original>
// kernel: forward.1
$region0: #{forward.1}
  #allocation0 [shape = 'u32[]', space=smem, size = 0x4, offset = 0x4, fixed_abs, tag = 'smem constant byte address 0x4 - core index']
  #allocation1 [shape = 'u32[144,128]{1,0:T(1,128)}', space=vmem, size = 0x12000, scoped, tag = 'internal scratch']
  %s0 = inlined_call_operand.vmem [shape: bf16[8,128], index: 0, kind: input, shape index: {}]
  %s1 = inlined_call_operand.hbm [shape: bf16[128,128], index: 1, kind: input, shape index: {}]
  %s2 = inlined_call_operand.vmem [shape: f32[1,128], index: 2, kind: input, shape index: {}]
  %s3 = inlined_call_operand.hbm [shape: f32[8,128], index: 3, kind: output, shape index: {}]
  %s4 = sld [smem:[#allocation0]]
  $region26: #{forward.1} parent=0
    _
  %s6 = ssub.s32 1, %s4
  %s7 = scalar_select 0, %s6, %s4
  $region1: #{forward.1} parent=0
    #allocation2 [shape = 'u8[32768]{0}', space=vmem, size = 0x8000, scoped, tag = 'input window, operand 1, single buffered']
    #allocation3 [shape = 's32[1]{0}', space=sflag, size = 0x4, scoped, tag = 'scoped memory for forward.1']
    #allocation4 [shape = 's32[1]{0}', space=sflag, size = 0x4, scoped, tag = 'scoped memory for forward.1']
    #allocation5 [shape = 'u8[4096]{0}', space=vmem, size = 0x1000, scoped, tag = 'output window, operand 0, single buffered']
    %8 = vsyncpa [#allocation3], 0
    %9 = vsyncpa [#allocation4], 0
    // Predicated region
    $region2: #{forward.1} parent=1 // pred_check
      _
    $region3: #{forward.1} parent=1 // pred_check_branch
      %11 = sbr.rel (0) target = $region5
    $region4: #{forward.1} parent=1 // pred_region
      _
    $region5: #{forward.1} parent=1 // pred_fallthru
      _
    // Predicated region
    $region6: #{forward.1} parent=1 // pred_check
      _
    $region7: #{forward.1} parent=1 // pred_check_branch
      %13 = sbr.rel (0) target = $region9
    $region8: #{forward.1} parent=1 // pred_region
      %s15 = ssub.s32 1024, 1024
      %16 = vsyncadd [#allocation3], %s15
      %s17 = sshll.u32 [#allocation2], 4
      %s18 = int_to_ptr.vmem [resolvable:$true] %s17
      %23 = dma.hbm_to_vmem [thread:$0]  %s1, 1024, %s18, [#allocation3], 64, 64, 4
    $region9: #{forward.1} parent=1 // pred_fallthru
      _
    // Predicated region
    $region10: #{forward.1} parent=1 // pred_check
      _
    $region11: #{forward.1} parent=1 // pred_check_branch
      %25 = sbr.rel (0) target = $region13
    $region12: #{forward.1} parent=1 // pred_region
      _
    $region13: #{forward.1} parent=1 // pred_fallthru
      _
    // Predicated region
    $region14: #{forward.1} parent=1 // pred_check
      _
    $region15: #{forward.1} parent=1 // pred_check_branch
      %27 = sbr.rel (0) target = $region17
    $region16: #{forward.1} parent=1 // pred_region
      %28 = dma.done [#allocation3], 1024
    $region17: #{forward.1} parent=1 // pred_fallthru
      _
    %v30 = vld [vmem:[%s0] sm:$0xf]
    %v31 = vld [vmem:[#allocation2] sm:$0xf]
    %v32 = vld [vmem:[#allocation2 + $0x4] sm:$0xf]
    %v33 = vld [vmem:[#allocation2 + $0x8] sm:$0xf]
    %v34 = vld [vmem:[#allocation2 + $0xc] sm:$0xf]
    %v35 = vld [vmem:[#allocation2 + $0x10] sm:$0xf]
    %v36 = vld [vmem:[#allocation2 + $0x14] sm:$0xf]
    %v37 = vld [vmem:[#allocation2 + $0x18] sm:$0xf]
    %v38 = vld [vmem:[#allocation2 + $0x1c] sm:$0xf]
    %v39 = vld [vmem:[#allocation2 + $0x20] sm:$0xf]
    %v40 = vld [vmem:[#allocation2 + $0x24] sm:$0xf]
    %v41 = vld [vmem:[#allocation2 + $0x28] sm:$0xf]
    %v42 = vld [vmem:[#allocation2 + $0x2c] sm:$0xf]
    %v43 = vld [vmem:[#allocation2 + $0x30] sm:$0xf]
    %v44 = vld [vmem:[#allocation2 + $0x34] sm:$0xf]
    %v45 = vld [vmem:[#allocation2 + $0x38] sm:$0xf]
    %v46 = vld [vmem:[#allocation2 + $0x3c] sm:$0xf]
    %v47 = vld [vmem:[%s2] sm:$0x1]
    %v49 = vlaneseq
    %v50 = vshrl.u32 %v49, 7
    %v51 = vsub.s32 0, %v50
    %v52 = vrot.slane %v47, %v51
    %v70 = vunpack.c.l.b16 %v31
    %v71 = vunpack.c.l.b16 %v32
    %v72 = vunpack.c.l.b16 %v33
    %v73 = vunpack.c.l.b16 %v34
    %v74 = vunpack.c.l.b16 %v35
    %v75 = vunpack.c.l.b16 %v36
    %v76 = vunpack.c.l.b16 %v37
    %v77 = vunpack.c.l.b16 %v38
    %v78 = vunpack.c.l.b16 %v39
    %v79 = vunpack.c.l.b16 %v40
    %v80 = vunpack.c.l.b16 %v41
    %v81 = vunpack.c.l.b16 %v42
    %v82 = vunpack.c.l.b16 %v43
    %v83 = vunpack.c.l.b16 %v44
    %v84 = vunpack.c.l.b16 %v45
    %v85 = vunpack.c.l.b16 %v46
    %v86 = vpack.c.b16 %v71, %v70
    %v87 = vpack.c.b16 %v73, %v72
    %v88 = vpack.c.b16 %v75, %v74
    %v89 = vpack.c.b16 %v77, %v76
    %v90 = vpack.c.b16 %v79, %v78
    %v91 = vpack.c.b16 %v81, %v80
    %v92 = vpack.c.b16 %v83, %v82
    %v93 = vpack.c.b16 %v85, %v84
    %102 = vmatprep.subr.bf16.mxu0 0
    %103 = vmatpush1.bf16.msra.mxu0 %v93
    %104 = vmatprep.subr.bf16.mxu0 0
    %105 = vmatpush1.bf16.msra.mxu0 %v92
    %106 = vmatprep.subr.bf16.mxu0 0
    %107 = vmatpush1.bf16.msra.mxu0 %v91
    %108 = vmatprep.subr.bf16.mxu0 0
    %109 = vmatpush1.bf16.msra.mxu0 %v90
    %110 = vmatprep.subr.bf16.mxu0 0
    %111 = vmatpush1.bf16.msra.mxu0 %v89
    %112 = vmatprep.subr.bf16.mxu0 0
    %113 = vmatpush1.bf16.msra.mxu0 %v88
    %114 = vmatprep.subr.bf16.mxu0 0
    %115 = vmatpush1.bf16.msra.mxu0 %v87
    %116 = vmatprep.subr.bf16.mxu0 0
    %117 = vmatpush1.bf16.msra.mxu0 %v86
    %118 = vmatprep.subr.bf16.mxu0 0
    %119 = vmatpush2.bf16.msra.mxu0 0
    %120 = vmatprep.subr.bf16.mxu0 0
    %121 = vmatpush2.bf16.msra.mxu0 0
    %122 = vmatprep.subr.bf16.mxu0 0
    %123 = vmatpush2.bf16.msra.mxu0 0
    %124 = vmatprep.subr.bf16.mxu0 0
    %125 = vmatpush2.bf16.msra.mxu0 0
    %126 = vmatprep.subr.bf16.mxu0 0
    %127 = vmatpush2.bf16.msra.mxu0 0
    %128 = vmatprep.subr.bf16.mxu0 0
    %129 = vmatpush2.bf16.msra.mxu0 0
    %130 = vmatprep.subr.bf16.mxu0 0
    %131 = vmatpush2.bf16.msra.mxu0 0
    %132 = vmatprep.subr.bf16.mxu0 0
    %133 = vmatpush2.bf16.msra.mxu0 0
    %134 = vmatprep.mubr.bf16.mxu0 0
    %135 = vmatmul.mubr.bf16.gmra.mxu0 %v30
    %v136 = vpop.f32.mrf.mxu0
    %v137 = vadd.f32 %v52, %v136
    %v138 = vpop.f32.mrf.mxu0
    %v139 = vpop.f32.mrf.mxu0
    %v140 = vpop.f32.mrf.mxu0
    %141 = vdwg.mxu0
    %142 = vst [vmem:[#allocation5] sm:$0xff] %v137
    // Predicated region
    $region18: #{forward.1} parent=1 // pred_check
      _
    $region19: #{forward.1} parent=1 // pred_check_branch
      %144 = sbr.rel (0) target = $region21
    $region20: #{forward.1} parent=1 // pred_region
      %s146 = ssub.s32 128, 128
      %147 = vsyncadd [#allocation4], %s146
      %s149 = sshll.u32 [#allocation5], 4
      %s150 = int_to_ptr.vmem [resolvable:$true] %s149
      %152 = dma.vmem_to_hbm [thread:$0]  %s150, 128, %s3, [#allocation4]
    $region21: #{forward.1} parent=1 // pred_fallthru
      _
    // Predicated region
    $region22: #{forward.1} parent=1 // pred_check
      _
    $region23: #{forward.1} parent=1 // pred_check_branch
      %154 = sbr.rel (0) target = $region25
    $region24: #{forward.1} parent=1 // pred_region
      %155 = dma.done [#allocation4], 128
    $region25: #{forward.1} parent=1 // pred_fallthru
      _
    %156 = vsyncpa [#allocation3], 1
    %157 = vsyncpa [#allocation4], 1

</llo_original>
